<compile_context>
chip_gen: v5e
topology: v5e:2x2
jax: 0.10.0
libtpu: 0.0.40
codegen_flags: <defaults>
</compile_context>

<pallas_src>
import functools

import jax
import jax.numpy as jnp
from jax.experimental import pallas as pl
from jax.experimental.pallas import tpu as pltpu

H_DIM = 32        # h_dim
L_DIM = 16        # l_dim
NUM_TYPES = 4     # len(adapt_ws)
H_TYPES = (0,)    # self.h_types ; everything else uses l_dim


def _adapt_kernel(x_ref, t_ref, w_ref, b_ref, o_ref, *, num_types, h_dim):
    """Per-tile type-conditional Linear + tanh (fused single bf16 matmul).

    x_ref: (tm, H)      bf16  node features
    t_ref: (tm, 1)      i32   node types (-1 for padded rows)
    w_ref: (H, T*H)     bf16  concatenated, zero-padded weights (x @ W == Linear)
    b_ref: (1, T*H)     f32   concatenated, zero-padded biases
    o_ref: (tm, H)      f32   output
    """
    x = x_ref[...]                                    # (tm, H) bf16
    t = t_ref[...]                                    # (tm, 1) i32
    # One MXU push (bf16 x bf16 -> f32 acc) with a full 128-wide output:
    # pre-activations for all types at once.
    pre = jnp.dot(x, w_ref[...], preferred_element_type=jnp.float32)
    pre = pre + b_ref[...]                            # (tm, T*H) f32
    # Select this node's 32-lane group BEFORE tanh (static lane slices + where).
    sel = jnp.zeros((x.shape[0], h_dim), jnp.float32)
    for tid in range(num_types):                      # static unroll
        grp = pre[:, tid * h_dim:(tid + 1) * h_dim]   # (tm, H)
        sel = jnp.where(t == tid, grp, sel)
    # Single f32 tanh on the selected (tm, H) block; padded rows (t == -1) stay 0.
    o_ref[...] = jnp.tanh(sel)


def adapt_forward(node_feature, node_type, w_cat, b_cat, *, tm=4096):
    """Type-conditional adapter: res[n] = tanh(x[n] @ W[type[n]] + b[type[n]])."""
    N, H = node_feature.shape
    TH = w_cat.shape[1]
    num_types = TH // H

    # Row tile: clamp to the (padded) row count; keep a multiple of 16 so the
    # bf16 feature tile sits on native sublane boundaries.
    tm = max(16, min(tm, ((N + 15) // 16) * 16))
    tm = (tm // 16) * 16
    n_blocks = -(-N // tm)
    n_pad = n_blocks * tm

    x = node_feature.astype(jnp.bfloat16)
    t_col = node_type.reshape(N, 1).astype(jnp.int32)
    if n_pad != N:
        x = jnp.pad(x, ((0, n_pad - N), (0, 0)))
        t_col = jnp.pad(t_col, ((0, n_pad - N), (0, 0)), constant_values=-1)
    w_bf16 = w_cat.astype(jnp.bfloat16)
    b_row = b_cat.reshape(1, TH).astype(jnp.float32)

    # VMEM budget: streamed tiles are lane-padded to 128 lanes and double
    # buffered (x bf16 + type i32 + out f32 = 2+4+4 B/row/lane); weights and
    # bias are small residents; add headroom for compiler scratch.
    lanes = 128
    stream_bytes = 2 * tm * lanes * (2 + 4 + 4)
    resident_bytes = 2 * (H * TH * 2 + TH * 4)
    vmem_bytes = int(min(stream_bytes + resident_bytes + (4 << 20), 100 << 20))

    cost = pl.CostEstimate(
        flops=2 * n_pad * H * TH,
        transcendentals=n_pad * H,
        bytes_accessed=n_pad * (H * 2 + 4 + H * 4) + H * TH * 2 + TH * 4,
    )

    kernel = functools.partial(_adapt_kernel, num_types=num_types, h_dim=H)
    out = pl.pallas_call(
        kernel,
        out_shape=jax.ShapeDtypeStruct((n_pad, H), jnp.float32),
        grid_spec=pltpu.PrefetchScalarGridSpec(
            num_scalar_prefetch=0,
            grid=(n_blocks,),
            in_specs=[
                pl.BlockSpec((tm, H), lambda i: (i, 0)),        # features (bf16)
                pl.BlockSpec((tm, 1), lambda i: (i, 0)),        # node types (i32)
                pl.BlockSpec((H, TH), lambda i: (0, 0)),        # W_cat (resident)
                pl.BlockSpec((1, TH), lambda i: (0, 0)),        # b_cat (resident)
            ],
            out_specs=pl.BlockSpec((tm, H), lambda i: (i, 0)),
        ),
        compiler_params=pltpu.CompilerParams(
            dimension_semantics=("parallel",),
            vmem_limit_bytes=vmem_bytes,
        ),
        cost_estimate=cost,
    )(x, t_col, w_bf16, b_row)
    return out[:N]


def init_params(key):
    """Deterministic torch-Linear-style init, concatenated + zero-padded.

    Returns:
      w_cat: (H, NUM_TYPES*H) input-major weights, type t in columns [t*H, t*H+d)
      b_cat: (NUM_TYPES*H,)   biases, type t in [t*H, t*H+d)
    """
    w_cat = jnp.zeros((H_DIM, NUM_TYPES * H_DIM), jnp.float32)
    b_cat = jnp.zeros((NUM_TYPES * H_DIM,), jnp.float32)
    keys = jax.random.split(key, 2 * NUM_TYPES)
    for t in range(NUM_TYPES):
        d = H_DIM if t in H_TYPES else L_DIM
        bound = 1.0 / (d ** 0.5)
        w = jax.random.uniform(keys[2 * t], (d, d), jnp.float32, -bound, bound)  # (out, in)
        b = jax.random.uniform(keys[2 * t + 1], (d,), jnp.float32, -bound, bound)
        col0 = t * H_DIM
        # store input-major (in, out) so that x @ W == torch Linear
        w_cat = w_cat.at[:d, col0:col0 + d].set(w.T)
        b_cat = b_cat.at[col0:col0 + d].set(b)
    return w_cat, b_cat


def reference(node_feature, node_type, w_cat, b_cat):
    """Pure-JAX f32 reference for the adapt stage (mirrors the torch loop)."""
    res = jnp.zeros((node_feature.shape[0], H_DIM), jnp.float32)
    for t in range(NUM_TYPES):
        d = H_DIM if t in H_TYPES else L_DIM
        col0 = t * H_DIM
        w = w_cat[:d, col0:col0 + d]
        b = b_cat[col0:col0 + d]
        y = jnp.tanh(node_feature[:, :d] @ w + b)
        y = jnp.pad(y, ((0, 0), (0, H_DIM - d)))
        res = jnp.where((node_type == t)[:, None], y, res)
    return res


if __name__ == "__main__":
    key = jax.random.PRNGKey(0)
    k_feat, k_type = jax.random.split(key)

    N = 200                                                 # not a multiple of the tile on purpose
    node_feature = jax.random.normal(k_feat, (N, H_DIM), jnp.float32)
    node_type = jax.random.randint(k_type, (N,), 0, NUM_TYPES, jnp.int32)

    # graph inputs (only consumed by the unavailable MultiDimHGT layers)
    E = 8
    edge_index = jnp.stack([jnp.arange(E) % N, (jnp.arange(E) * 3) % N]).astype(jnp.int32)
    edge_type = jnp.zeros((E,), jnp.int32)
    edge_time = jnp.zeros((E,), jnp.int32)

    w_cat, b_cat = init_params(jax.random.PRNGKey(42))
    ref = reference(node_feature, node_type, w_cat, b_cat)

    # Default (large) tile: clamps to a single 208-row block at this small N;
    # production N uses tm=4096 for near-roofline streaming on all generations.
    meta_xs = adapt_forward(node_feature, node_type, w_cat, b_cat)
    jax.block_until_ready(meta_xs)
    assert meta_xs.shape == (N, H_DIM)
    # bf16 feature/weight rounding -> loosened tolerance vs the f32 reference.
    assert jnp.allclose(meta_xs, ref, atol=1e-2), "Pallas output mismatch vs reference (default tm)"

    # Small tile to exercise a multi-step grid + row padding path.
    meta_xs_small = adapt_forward(node_feature, node_type, w_cat, b_cat, tm=64)
    jax.block_until_ready(meta_xs_small)
    assert jnp.allclose(meta_xs_small, ref, atol=1e-2), "Pallas output mismatch vs reference (tm=64)"

    print("KERNEL_OK")
</pallas_src>

<mosaic_0001>
module attributes {stable_mosaic.version = 11 : i64} {
  func.func @_adapt_kernel(%arg0: i32, %arg1: memref<208x32xbf16, #tpu.memory_space<vmem>>, %arg2: memref<208x1xi32, #tpu.memory_space<vmem>>, %arg3: memref<32x128xbf16, #tpu.memory_space<vmem>>, %arg4: memref<1x128xf32, #tpu.memory_space<vmem>>, %arg5: memref<208x32xf32, #tpu.memory_space<vmem>>) attributes {dimension_semantics = [#tpu.dimension_semantics<parallel>], iteration_bounds = array<i64: 1>, scalar_prefetch = 0 : i64, scratch_operands = 0 : i64, tpu.core_type = #tpu.core_type<tc>, window_params = [{transform_indices = @transform_0, window_bounds = array<i64: 208, 32>}, {transform_indices = @transform_1, window_bounds = array<i64: 208, 1>}, {pipeline_mode = #tpu.pipeline_mode<synchronous>, transform_indices = @transform_2, window_bounds = array<i64: 32, 128>}, {pipeline_mode = #tpu.pipeline_mode<synchronous>, transform_indices = @transform_3, window_bounds = array<i64: 1, 128>}, {transform_indices = @transform_4, window_bounds = array<i64: 208, 32>}]} {
    %c0 = arith.constant 0 : index
    %c0_0 = arith.constant 0 : index
    %0 = vector.load %arg1[%c0, %c0_0] : memref<208x32xbf16, #tpu.memory_space<vmem>>, vector<208x32xbf16>
    %c0_1 = arith.constant 0 : index
    %c0_2 = arith.constant 0 : index
    %1 = vector.load %arg2[%c0_1, %c0_2] : memref<208x1xi32, #tpu.memory_space<vmem>>, vector<208x1xi32>
    %c0_3 = arith.constant 0 : index
    %c0_4 = arith.constant 0 : index
    %2 = vector.load %arg3[%c0_3, %c0_4] : memref<32x128xbf16, #tpu.memory_space<vmem>>, vector<32x128xbf16>
    %cst = arith.constant dense<0.000000e+00> : vector<208x128xf32>
    %3 = tpu.matmul %0, %2, %cst {dimension_numbers = #tpu.dot_dimension_numbers<[1], [0], [0], [1], [0, 0, 1, 1], [], []>} : vector<208x32xbf16>, vector<32x128xbf16>, vector<208x128xf32> -> vector<208x128xf32>
    %c0_5 = arith.constant 0 : index
    %c0_6 = arith.constant 0 : index
    %4 = vector.load %arg4[%c0_5, %c0_6] : memref<1x128xf32, #tpu.memory_space<vmem>>, vector<1x128xf32>
    %5 = vector.broadcast %4 : vector<1x128xf32> to vector<208x128xf32>
    %6 = arith.addf %3, %5 : vector<208x128xf32>
    %cst_7 = arith.constant 0.000000e+00 : f32
    %7 = vector.broadcast %cst_7 : f32 to vector<208x32xf32>
    %8 = vector.extract_strided_slice %6 {offsets = [0, 0], sizes = [208, 32], strides = [1, 1]} : vector<208x128xf32> to vector<208x32xf32>
    %c0_i32 = arith.constant 0 : i32
    %9 = vector.broadcast %c0_i32 : i32 to vector<208x1xi32>
    %10 = arith.cmpi eq, %1, %9 : vector<208x1xi32>
    %11 = vector.shape_cast %10 : vector<208x1xi1> to vector<208x1xi1>
    %12 = vector.broadcast %11 : vector<208x1xi1> to vector<208x32xi1>
    %13 = arith.select %12, %8, %7 : vector<208x32xi1>, vector<208x32xf32>
    %14 = vector.extract_strided_slice %6 {offsets = [0, 32], sizes = [208, 32], strides = [1, 1]} : vector<208x128xf32> to vector<208x32xf32>
    %c1_i32 = arith.constant 1 : i32
    %15 = vector.broadcast %c1_i32 : i32 to vector<208x1xi32>
    %16 = arith.cmpi eq, %1, %15 : vector<208x1xi32>
    %17 = vector.shape_cast %16 : vector<208x1xi1> to vector<208x1xi1>
    %18 = vector.broadcast %17 : vector<208x1xi1> to vector<208x32xi1>
    %19 = arith.select %18, %14, %13 : vector<208x32xi1>, vector<208x32xf32>
    %20 = vector.extract_strided_slice %6 {offsets = [0, 64], sizes = [208, 32], strides = [1, 1]} : vector<208x128xf32> to vector<208x32xf32>
    %c2_i32 = arith.constant 2 : i32
    %21 = vector.broadcast %c2_i32 : i32 to vector<208x1xi32>
    %22 = arith.cmpi eq, %1, %21 : vector<208x1xi32>
    %23 = vector.shape_cast %22 : vector<208x1xi1> to vector<208x1xi1>
    %24 = vector.broadcast %23 : vector<208x1xi1> to vector<208x32xi1>
    %25 = arith.select %24, %20, %19 : vector<208x32xi1>, vector<208x32xf32>
    %26 = vector.extract_strided_slice %6 {offsets = [0, 96], sizes = [208, 32], strides = [1, 1]} : vector<208x128xf32> to vector<208x32xf32>
    %c3_i32 = arith.constant 3 : i32
    %27 = vector.broadcast %c3_i32 : i32 to vector<208x1xi32>
    %28 = arith.cmpi eq, %1, %27 : vector<208x1xi32>
    %29 = vector.shape_cast %28 : vector<208x1xi1> to vector<208x1xi1>
    %30 = vector.broadcast %29 : vector<208x1xi1> to vector<208x32xi1>
    %31 = arith.select %30, %26, %25 : vector<208x32xi1>, vector<208x32xf32>
    %32 = math.tanh %31 : vector<208x32xf32>
    %c0_8 = arith.constant 0 : index
    %c0_9 = arith.constant 0 : index
    %33 = vector.load %arg5[%c0_8, %c0_9] : memref<208x32xf32, #tpu.memory_space<vmem>>, vector<208x32xf32>
    tpu.vector_store %arg5[%c0_8, %c0_9], %32 {strides = array<i32>} : memref<208x32xf32, #tpu.memory_space<vmem>>, vector<208x32xf32>,
    return
  }
  func.func @transform_0(%arg0: i32) -> (i32, i32) {
    %c0_i32 = arith.constant 0 : i32
    %c0_i32_0 = arith.constant 0 : i32
    return %arg0, %c0_i32 : i32, i32
  }
  func.func @transform_1(%arg0: i32) -> (i32, i32) {
    %c0_i32 = arith.constant 0 : i32
    %c0_i32_0 = arith.constant 0 : i32
    return %arg0, %c0_i32 : i32, i32
  }
  func.func @transform_2(%arg0: i32) -> (i32, i32) {
    %c0_i32 = arith.constant 0 : i32
    %c0_i32_0 = arith.constant 0 : i32
    %c0_i32_1 = arith.constant 0 : i32
    return %c0_i32, %c0_i32_0 : i32, i32
  }
  func.func @transform_3(%arg0: i32) -> (i32, i32) {
    %c0_i32 = arith.constant 0 : i32
    %c0_i32_0 = arith.constant 0 : i32
    %c0_i32_1 = arith.constant 0 : i32
    return %c0_i32, %c0_i32_0 : i32, i32
  }
  func.func @transform_4(%arg0: i32) -> (i32, i32) {
    %c0_i32 = arith.constant 0 : i32
    %c0_i32_0 = arith.constant 0 : i32
    return %arg0, %c0_i32 : i32, i32
  }
}

</mosaic_0001>

<llo_original>
// kernel: tpu_custom_call.1
$region0: #{tpu_custom_call.1}
  #allocation0 [shape = 'u32[]', space=smem, size = 0x4, offset = 0x4, fixed_abs, tag = 'smem constant byte address 0x4 - core index']
  #allocation1 [shape = 'u32[72,128]{1,0:T(1,128)}', space=vmem, size = 0x9000, scoped, tag = 'internal scratch']
  %s0 = inlined_call_operand.vmem [shape: bf16[208,32], index: 0, kind: input, shape index: {}]
  %s1 = inlined_call_operand.vmem [shape: s32[208,1], index: 1, kind: input, shape index: {}]
  %s2 = inlined_call_operand.vmem [shape: bf16[32,128], index: 2, kind: input, shape index: {}]
  %s3 = inlined_call_operand.vmem [shape: f32[1,128], index: 3, kind: input, shape index: {}]
  %s4 = inlined_call_operand.vmem [shape: f32[208,32], index: 4, kind: output, shape index: {}]
  %s5 = sld [smem:[#allocation0]]
  $region26: #{tpu_custom_call.1} parent=0
    _
  %s7 = ssub.s32 1, %s5
  %s8 = scalar_select 0, %s7, %s5
  // Predicated region
  $region2: #{tpu_custom_call.1} parent=0 // pred_check
    _
  $region3: #{tpu_custom_call.1} parent=0 // pred_check_branch
    %10 = sbr.rel (0) target = $region5
  $region4: #{tpu_custom_call.1} parent=0 // pred_region
    _
  $region5: #{tpu_custom_call.1} parent=0 // pred_fallthru
    _
  // Predicated region
  $region6: #{tpu_custom_call.1} parent=0 // pred_check
    _
  $region7: #{tpu_custom_call.1} parent=0 // pred_check_branch
    %12 = sbr.rel (0) target = $region9
  $region8: #{tpu_custom_call.1} parent=0 // pred_region
    _
  $region9: #{tpu_custom_call.1} parent=0 // pred_fallthru
    _
  // Predicated region
  $region10: #{tpu_custom_call.1} parent=0 // pred_check
    _
  $region11: #{tpu_custom_call.1} parent=0 // pred_check_branch
    %14 = sbr.rel (0) target = $region13
  $region12: #{tpu_custom_call.1} parent=0 // pred_region
    _
  $region13: #{tpu_custom_call.1} parent=0 // pred_fallthru
    _
  // Predicated region
  $region14: #{tpu_custom_call.1} parent=0 // pred_check
    _
  $region15: #{tpu_custom_call.1} parent=0 // pred_check_branch
    %16 = sbr.rel (0) target = $region17
  $region16: #{tpu_custom_call.1} parent=0 // pred_region
    _
  $region17: #{tpu_custom_call.1} parent=0 // pred_fallthru
    _
  %v18 = vld [vmem:[%s0] sm:$0xf]
  %v19 = vld [vmem:[%s0 + $0x4] sm:$0xf]
  %v20 = vld [vmem:[%s0 + $0x8] sm:$0xf]
  %v21 = vld [vmem:[%s0 + $0xc] sm:$0xf]
  %v22 = vld [vmem:[%s0 + $0x10] sm:$0xf]
  %v23 = vld [vmem:[%s0 + $0x14] sm:$0xf]
  %v24 = vld [vmem:[%s0 + $0x18] sm:$0xf]
  %v25 = vld [vmem:[%s0 + $0x1c] sm:$0xf]
  %v26 = vld [vmem:[%s0 + $0x20] sm:$0xf]
  %v27 = vld [vmem:[%s0 + $0x24] sm:$0xf]
  %v28 = vld [vmem:[%s0 + $0x28] sm:$0xf]
  %v29 = vld [vmem:[%s0 + $0x2c] sm:$0xf]
  %v30 = vld [vmem:[%s0 + $0x30] sm:$0xf]
  %v31 = vld [vmem:[%s0 + $0x34] sm:$0xf]
  %v32 = vld [vmem:[%s0 + $0x38] sm:$0xf]
  %v33 = vld [vmem:[%s0 + $0x3c] sm:$0xf]
  %v34 = vld [vmem:[%s0 + $0x40] sm:$0xf]
  %v35 = vld [vmem:[%s0 + $0x44] sm:$0xf]
  %v36 = vld [vmem:[%s0 + $0x48] sm:$0xf]
  %v37 = vld [vmem:[%s0 + $0x4c] sm:$0xf]
  %v38 = vld [vmem:[%s0 + $0x50] sm:$0xf]
  %v39 = vld [vmem:[%s0 + $0x54] sm:$0xf]
  %v40 = vld [vmem:[%s0 + $0x58] sm:$0xf]
  %v41 = vld [vmem:[%s0 + $0x5c] sm:$0xf]
  %v42 = vld [vmem:[%s0 + $0x60] sm:$0xf]
  %v43 = vld [vmem:[%s0 + $0x64] sm:$0xf]
  %v44 = vld [vmem:[%s1] sm:$0xff]
  %v45 = vld [vmem:[%s1 + $0x8] sm:$0xff]
  %v46 = vld [vmem:[%s1 + $0x10] sm:$0xff]
  %v47 = vld [vmem:[%s1 + $0x18] sm:$0xff]
  %v48 = vld [vmem:[%s1 + $0x20] sm:$0xff]
  %v49 = vld [vmem:[%s1 + $0x28] sm:$0xff]
  %v50 = vld [vmem:[%s1 + $0x30] sm:$0xff]
  %v51 = vld [vmem:[%s1 + $0x38] sm:$0xff]
  %v52 = vld [vmem:[%s1 + $0x40] sm:$0xff]
  %v53 = vld [vmem:[%s1 + $0x48] sm:$0xff]
  %v54 = vld [vmem:[%s1 + $0x50] sm:$0xff]
  %v55 = vld [vmem:[%s1 + $0x58] sm:$0xff]
  %v56 = vld [vmem:[%s1 + $0x60] sm:$0xff]
  %v57 = vld [vmem:[%s1 + $0x68] sm:$0xff]
  %v58 = vld [vmem:[%s1 + $0x70] sm:$0xff]
  %v59 = vld [vmem:[%s1 + $0x78] sm:$0xff]
  %v60 = vld [vmem:[%s1 + $0x80] sm:$0xff]
  %v61 = vld [vmem:[%s1 + $0x88] sm:$0xff]
  %v62 = vld [vmem:[%s1 + $0x90] sm:$0xff]
  %v63 = vld [vmem:[%s1 + $0x98] sm:$0xff]
  %v64 = vld [vmem:[%s1 + $0xa0] sm:$0xff]
  %v65 = vld [vmem:[%s1 + $0xa8] sm:$0xff]
  %v66 = vld [vmem:[%s1 + $0xb0] sm:$0xff]
  %v67 = vld [vmem:[%s1 + $0xb8] sm:$0xff]
  %v68 = vld [vmem:[%s1 + $0xc0] sm:$0xff]
  %v69 = vld [vmem:[%s1 + $0xc8] sm:$0xff]
  %v70 = vld [vmem:[%s2] sm:$0xf]
  %v71 = vld [vmem:[%s2 + $0x4] sm:$0xf]
  %v72 = vld [vmem:[%s2 + $0x8] sm:$0xf]
  %v73 = vld [vmem:[%s2 + $0xc] sm:$0xf]
  %v74 = vld [vmem:[%s3] sm:$0x1]
  %v76 = vperm.slane %v74, 0
  %v104 = vunpack.c.l.b16 %v18
  %v105 = vunpack.c.l.b16 %v19
  %v106 = vunpack.c.l.b16 %v20
  %v107 = vunpack.c.l.b16 %v21
  %v108 = vunpack.c.l.b16 %v22
  %v109 = vunpack.c.l.b16 %v23
  %v110 = vunpack.c.l.b16 %v24
  %v111 = vunpack.c.l.b16 %v25
  %v112 = vunpack.c.l.b16 %v26
  %v113 = vunpack.c.l.b16 %v27
  %v114 = vunpack.c.l.b16 %v28
  %v115 = vunpack.c.l.b16 %v29
  %v116 = vunpack.c.l.b16 %v30
  %v117 = vunpack.c.l.b16 %v31
  %v118 = vunpack.c.l.b16 %v32
  %v119 = vunpack.c.l.b16 %v33
  %v120 = vunpack.c.l.b16 %v34
  %v121 = vunpack.c.l.b16 %v35
  %v122 = vunpack.c.l.b16 %v36
  %v123 = vunpack.c.l.b16 %v37
  %v124 = vunpack.c.l.b16 %v38
  %v125 = vunpack.c.l.b16 %v39
  %v126 = vunpack.c.l.b16 %v40
  %v127 = vunpack.c.l.b16 %v41
  %v128 = vunpack.c.l.b16 %v42
  %v129 = vunpack.c.l.b16 %v43
  %v130 = vpack.c.b16 %v105, %v104
  %v131 = vpack.c.b16 %v107, %v106
  %v132 = vpack.c.b16 %v109, %v108
  %v133 = vpack.c.b16 %v111, %v110
  %v134 = vpack.c.b16 %v113, %v112
  %v135 = vpack.c.b16 %v115, %v114
  %v136 = vpack.c.b16 %v117, %v116
  %v137 = vpack.c.b16 %v119, %v118
  %v138 = vpack.c.b16 %v121, %v120
  %v139 = vpack.c.b16 %v123, %v122
  %v140 = vpack.c.b16 %v125, %v124
  %v141 = vpack.c.b16 %v127, %v126
  %v142 = vpack.c.b16 %v129, %v128
  %v147 = vunpack.c.l.b16 %v70
  %v148 = vunpack.c.l.b16 %v71
  %v149 = vunpack.c.l.b16 %v72
  %v150 = vunpack.c.l.b16 %v73
  %v151 = vpack.c.b16 %v148, %v147
  %v152 = vpack.c.b16 %v150, %v149
  %vm155 = vcmask 261120
  %v157 = vsel %vm155, %v130, 0
  %v160 = vsel %vm155, %v131, 0
  %v163 = vsel %vm155, %v132, 0
  %v166 = vsel %vm155, %v133, 0
  %v169 = vsel %vm155, %v134, 0
  %v172 = vsel %vm155, %v135, 0
  %v175 = vsel %vm155, %v136, 0
  %v178 = vsel %vm155, %v137, 0
  %v181 = vsel %vm155, %v138, 0
  %v184 = vsel %vm155, %v139, 0
  %v187 = vsel %vm155, %v140, 0
  %v190 = vsel %vm155, %v141, 0
  %v193 = vsel %vm155, %v142, 0
  %195 = vmatpush.bf16.msra.mxu0 0
  %196 = vmatpush.bf16.msra.mxu0 0
  %197 = vmatpush.bf16.msra.mxu0 0
  %198 = vmatpush.bf16.msra.mxu0 0
  %199 = vmatpush.bf16.msra.mxu0 0
  %200 = vmatpush.bf16.msra.mxu0 0
  %201 = vmatpush.bf16.msra.mxu0 %v152
  %202 = vmatpush.bf16.msra.mxu0 %v151
  %203 = vmatmul.bf16.gmra.mxu0 %v157
  %v204 = vpop.f32.mrf.mxu0
  %v205 = vadd.f32 %v76, %v204
  %v206 = vpop.f32.mrf.mxu0
  %v207 = vadd.f32 %v76, %v206
  %208 = vmatmul.bf16.gmra.mxu0 %v160
  %v209 = vpop.f32.mrf.mxu0
  %v210 = vadd.f32 %v76, %v209
  %v211 = vpop.f32.mrf.mxu0
  %v212 = vadd.f32 %v76, %v211
  %213 = vmatmul.bf16.gmra.mxu0 %v163
  %v214 = vpop.f32.mrf.mxu0
  %v215 = vadd.f32 %v76, %v214
  %v216 = vpop.f32.mrf.mxu0
  %v217 = vadd.f32 %v76, %v216
  %218 = vmatmul.bf16.gmra.mxu0 %v166
  %v219 = vpop.f32.mrf.mxu0
  %v220 = vadd.f32 %v76, %v219
  %v221 = vpop.f32.mrf.mxu0
  %v222 = vadd.f32 %v76, %v221
  %223 = vmatmul.bf16.gmra.mxu0 %v169
  %v224 = vpop.f32.mrf.mxu0
  %v225 = vadd.f32 %v76, %v224
  %v226 = vpop.f32.mrf.mxu0
  %v227 = vadd.f32 %v76, %v226
  %228 = vmatmul.bf16.gmra.mxu0 %v172
  %v229 = vpop.f32.mrf.mxu0
  %v230 = vadd.f32 %v76, %v229
  %v231 = vpop.f32.mrf.mxu0
  %v232 = vadd.f32 %v76, %v231
  %233 = vmatmul.bf16.gmra.mxu0 %v175
  %v234 = vpop.f32.mrf.mxu0
  %v235 = vadd.f32 %v76, %v234
  %v236 = vpop.f32.mrf.mxu0
  %v237 = vadd.f32 %v76, %v236
  %238 = vmatmul.bf16.gmra.mxu0 %v178
  %v239 = vpop.f32.mrf.mxu0
  %v240 = vadd.f32 %v76, %v239
  %v241 = vpop.f32.mrf.mxu0
  %v242 = vadd.f32 %v76, %v241
  %243 = vmatmul.bf16.gmra.mxu0 %v181
  %v244 = vpop.f32.mrf.mxu0
  %v245 = vadd.f32 %v76, %v244
  %v246 = vpop.f32.mrf.mxu0
  %v247 = vadd.f32 %v76, %v246
  %248 = vmatmul.bf16.gmra.mxu0 %v184
  %v249 = vpop.f32.mrf.mxu0
  %v250 = vadd.f32 %v76, %v249
  %v251 = vpop.f32.mrf.mxu0
  %v252 = vadd.f32 %v76, %v251
  %253 = vmatmul.bf16.gmra.mxu0 %v187
  %v254 = vpop.f32.mrf.mxu0
  %v255 = vadd.f32 %v76, %v254
  %v256 = vpop.f32.mrf.mxu0
  %v257 = vadd.f32 %v76, %v256
  %258 = vmatmul.bf16.gmra.mxu0 %v190
  %v259 = vpop.f32.mrf.mxu0
  %v260 = vadd.f32 %v76, %v259
  %v261 = vpop.f32.mrf.mxu0
  %v262 = vadd.f32 %v76, %v261
  %263 = vmatmul.bf16.gmra.mxu0 %v193
  %v264 = vpop.f32.mrf.mxu0
  %v265 = vadd.f32 %v76, %v264
  %v266 = vpop.f32.mrf.mxu0
  %v267 = vadd.f32 %v76, %v266
  %268 = vdwg.mxu0
  %vm269 = vcmp.eq.s32.totalorder %v44, 0
  %vm270 = vcmp.eq.s32.totalorder %v45, 0
  %vm271 = vcmp.eq.s32.totalorder %v46, 0
  %vm272 = vcmp.eq.s32.totalorder %v47, 0
  %vm273 = vcmp.eq.s32.totalorder %v48, 0
  %vm274 = vcmp.eq.s32.totalorder %v49, 0
  %vm275 = vcmp.eq.s32.totalorder %v50, 0
  %vm276 = vcmp.eq.s32.totalorder %v51, 0
  %vm277 = vcmp.eq.s32.totalorder %v52, 0
  %vm278 = vcmp.eq.s32.totalorder %v53, 0
  %vm279 = vcmp.eq.s32.totalorder %v54, 0
  %vm280 = vcmp.eq.s32.totalorder %v55, 0
  %vm281 = vcmp.eq.s32.totalorder %v56, 0
  %vm282 = vcmp.eq.s32.totalorder %v57, 0
  %vm283 = vcmp.eq.s32.totalorder %v58, 0
  %vm284 = vcmp.eq.s32.totalorder %v59, 0
  %vm285 = vcmp.eq.s32.totalorder %v60, 0
  %vm286 = vcmp.eq.s32.totalorder %v61, 0
  %vm287 = vcmp.eq.s32.totalorder %v62, 0
  %vm288 = vcmp.eq.s32.totalorder %v63, 0
  %vm289 = vcmp.eq.s32.totalorder %v64, 0
  %vm290 = vcmp.eq.s32.totalorder %v65, 0
  %vm291 = vcmp.eq.s32.totalorder %v66, 0
  %vm292 = vcmp.eq.s32.totalorder %v67, 0
  %vm293 = vcmp.eq.s32.totalorder %v68, 0
  %vm294 = vcmp.eq.s32.totalorder %v69, 0
  %v295 = vsel %vm269, 1, 0
  %v296 = vsel %vm270, 1, 0
  %v297 = vsel %vm271, 1, 0
  %v298 = vsel %vm272, 1, 0
  %v299 = vsel %vm273, 1, 0
  %v300 = vsel %vm274, 1, 0
  %v301 = vsel %vm275, 1, 0
  %v302 = vsel %vm276, 1, 0
  %v303 = vsel %vm277, 1, 0
  %v304 = vsel %vm278, 1, 0
  %v305 = vsel %vm279, 1, 0
  %v306 = vsel %vm280, 1, 0
  %v307 = vsel %vm281, 1, 0
  %v308 = vsel %vm282, 1, 0
  %v309 = vsel %vm283, 1, 0
  %v310 = vsel %vm284, 1, 0
  %v311 = vsel %vm285, 1, 0
  %v312 = vsel %vm286, 1, 0
  %v313 = vsel %vm287, 1, 0
  %v314 = vsel %vm288, 1, 0
  %v315 = vsel %vm289, 1, 0
  %v316 = vsel %vm290, 1, 0
  %v317 = vsel %vm291, 1, 0
  %v318 = vsel %vm292, 1, 0
  %v319 = vsel %vm293, 1, 0
  %v320 = vsel %vm294, 1, 0
  %321 = vset.pattern.permute.xlu0 0
  %322 = vperm.xlu0 %321, %v295
  %v323 = vpop.permute.xlu0 %322
  %324 = vset.pattern.permute.xlu0 0
  %325 = vperm.xlu0 %324, %v296
  %v326 = vpop.permute.xlu0 %325
  %327 = vset.pattern.permute.xlu0 0
  %328 = vperm.xlu0 %327, %v297
  %v329 = vpop.permute.xlu0 %328
  %330 = vset.pattern.permute.xlu0 0
  %331 = vperm.xlu0 %330, %v298
  %v332 = vpop.permute.xlu0 %331
  %333 = vset.pattern.permute.xlu0 0
  %334 = vperm.xlu0 %333, %v299
  %v335 = vpop.permute.xlu0 %334
  %336 = vset.pattern.permute.xlu0 0
  %337 = vperm.xlu0 %336, %v300
  %v338 = vpop.permute.xlu0 %337
  %339 = vset.pattern.permute.xlu0 0
  %340 = vperm.xlu0 %339, %v301
  %v341 = vpop.permute.xlu0 %340
  %342 = vset.pattern.permute.xlu0 0
  %343 = vperm.xlu0 %342, %v302
  %v344 = vpop.permute.xlu0 %343
  %345 = vset.pattern.permute.xlu0 0
  %346 = vperm.xlu0 %345, %v303
  %v347 = vpop.permute.xlu0 %346
  %348 = vset.pattern.permute.xlu0 0
  %349 = vperm.xlu0 %348, %v304
  %v350 = vpop.permute.xlu0 %349
  %351 = vset.pattern.permute.xlu0 0
  %352 = vperm.xlu0 %351, %v305
  %v353 = vpop.permute.xlu0 %352
  %354 = vset.pattern.permute.xlu0 0
  %355 = vperm.xlu0 %354, %v306
  %v356 = vpop.permute.xlu0 %355
  %357 = vset.pattern.permute.xlu0 0
  %358 = vperm.xlu0 %357, %v307
  %v359 = vpop.permute.xlu0 %358
  %360 = vset.pattern.permute.xlu0 0
  %361 = vperm.xlu0 %360, %v308
  %v362 = vpop.permute.xlu0 %361
  %363 = vset.pattern.permute.xlu0 0
  %364 = vperm.xlu0 %363, %v309
  %v365 = vpop.permute.xlu0 %364
  %366 = vset.pattern.permute.xlu0 0
  %367 = vperm.xlu0 %366, %v310
  %v368 = vpop.permute.xlu0 %367
  %369 = vset.pattern.permute.xlu0 0
  %370 = vperm.xlu0 %369, %v311
  %v371 = vpop.permute.xlu0 %370
  %372 = vset.pattern.permute.xlu0 0
  %373 = vperm.xlu0 %372, %v312
  %v374 = vpop.permute.xlu0 %373
  %375 = vset.pattern.permute.xlu0 0
  %376 = vperm.xlu0 %375, %v313
  %v377 = vpop.permute.xlu0 %376
  %378 = vset.pattern.permute.xlu0 0
  %379 = vperm.xlu0 %378, %v314
  %v380 = vpop.permute.xlu0 %379
  %381 = vset.pattern.permute.xlu0 0
  %382 = vperm.xlu0 %381, %v315
  %v383 = vpop.permute.xlu0 %382
  %384 = vset.pattern.permute.xlu0 0
  %385 = vperm.xlu0 %384, %v316
  %v386 = vpop.permute.xlu0 %385
  %387 = vset.pattern.permute.xlu0 0
  %388 = vperm.xlu0 %387, %v317
  %v389 = vpop.permute.xlu0 %388
  %390 = vset.pattern.permute.xlu0 0
  %391 = vperm.xlu0 %390, %v318
  %v392 = vpop.permute.xlu0 %391
  %393 = vset.pattern.permute.xlu0 0
  %394 = vperm.xlu0 %393, %v319
  %v395 = vpop.permute.xlu0 %394
  %396 = vset.pattern.permute.xlu0 0
  %397 = vperm.xlu0 %396, %v320
  %v398 = vpop.permute.xlu0 %397
  %vm399 = vcmp.eq.s32.totalorder %v323, 1
  %vm400 = vcmp.eq.s32.totalorder %v326, 1
  %vm401 = vcmp.eq.s32.totalorder %v329, 1
  %vm402 = vcmp.eq.s32.totalorder %v332, 1
  %vm403 = vcmp.eq.s32.totalorder %v335, 1
  %vm404 = vcmp.eq.s32.totalorder %v338, 1
  %vm405 = vcmp.eq.s32.totalorder %v341, 1
  %vm406 = vcmp.eq.s32.totalorder %v344, 1
  %vm407 = vcmp.eq.s32.totalorder %v347, 1
  %vm408 = vcmp.eq.s32.totalorder %v350, 1
  %vm409 = vcmp.eq.s32.totalorder %v353, 1
  %vm410 = vcmp.eq.s32.totalorder %v356, 1
  %vm411 = vcmp.eq.s32.totalorder %v359, 1
  %vm412 = vcmp.eq.s32.totalorder %v362, 1
  %vm413 = vcmp.eq.s32.totalorder %v365, 1
  %vm414 = vcmp.eq.s32.totalorder %v368, 1
  %vm415 = vcmp.eq.s32.totalorder %v371, 1
  %vm416 = vcmp.eq.s32.totalorder %v374, 1
  %vm417 = vcmp.eq.s32.totalorder %v377, 1
  %vm418 = vcmp.eq.s32.totalorder %v380, 1
  %vm419 = vcmp.eq.s32.totalorder %v383, 1
  %vm420 = vcmp.eq.s32.totalorder %v386, 1
  %vm421 = vcmp.eq.s32.totalorder %v389, 1
  %vm422 = vcmp.eq.s32.totalorder %v392, 1
  %vm423 = vcmp.eq.s32.totalorder %v395, 1
  %vm424 = vcmp.eq.s32.totalorder %v398, 1
  %v425 = vsel %vm399, %v205, 0.0
  %v426 = vsel %vm400, %v207, 0.0
  %v427 = vsel %vm401, %v210, 0.0
  %v428 = vsel %vm402, %v212, 0.0
  %v429 = vsel %vm403, %v215, 0.0
  %v430 = vsel %vm404, %v217, 0.0
  %v431 = vsel %vm405, %v220, 0.0
  %v432 = vsel %vm406, %v222, 0.0
  %v433 = vsel %vm407, %v225, 0.0
  %v434 = vsel %vm408, %v227, 0.0
  %v435 = vsel %vm409, %v230, 0.0
  %v436 = vsel %vm410, %v232, 0.0
  %v437 = vsel %vm411, %v235, 0.0
  %v438 = vsel %vm412, %v237, 0.0
  %v439 = vsel %vm413, %v240, 0.0
  %v440 = vsel %vm414, %v242, 0.0
  %v441 = vsel %vm415, %v245, 0.0
  %v442 = vsel %vm416, %v247, 0.0
  %v443 = vsel %vm417, %v250, 0.0
  %v444 = vsel %vm418, %v252, 0.0
  %v445 = vsel %vm419, %v255, 0.0
  %v446 = vsel %vm420, %v257, 0.0
  %v447 = vsel %vm421, %v260, 0.0
  %v448 = vsel %vm422, %v262, 0.0
  %v449 = vsel %vm423, %v265, 0.0
  %v450 = vsel %vm424, %v267, 0.0
  %vm451 = vcmp.eq.s32.totalorder %v44, 1
  %vm452 = vcmp.eq.s32.totalorder %v45, 1
  %vm453 = vcmp.eq.s32.totalorder %v46, 1
  %vm454 = vcmp.eq.s32.totalorder %v47, 1
  %vm455 = vcmp.eq.s32.totalorder %v48, 1
  %vm456 = vcmp.eq.s32.totalorder %v49, 1
  %vm457 = vcmp.eq.s32.totalorder %v50, 1
  %vm458 = vcmp.eq.s32.totalorder %v51, 1
  %vm459 = vcmp.eq.s32.totalorder %v52, 1
  %vm460 = vcmp.eq.s32.totalorder %v53, 1
  %vm461 = vcmp.eq.s32.totalorder %v54, 1
  %vm462 = vcmp.eq.s32.totalorder %v55, 1
  %vm463 = vcmp.eq.s32.totalorder %v56, 1
  %vm464 = vcmp.eq.s32.totalorder %v57, 1
  %vm465 = vcmp.eq.s32.totalorder %v58, 1
  %vm466 = vcmp.eq.s32.totalorder %v59, 1
  %vm467 = vcmp.eq.s32.totalorder %v60, 1
  %vm468 = vcmp.eq.s32.totalorder %v61, 1
  %vm469 = vcmp.eq.s32.totalorder %v62, 1
  %vm470 = vcmp.eq.s32.totalorder %v63, 1
  %vm471 = vcmp.eq.s32.totalorder %v64, 1
  %vm472 = vcmp.eq.s32.totalorder %v65, 1
  %vm473 = vcmp.eq.s32.totalorder %v66, 1
  %vm474 = vcmp.eq.s32.totalorder %v67, 1
  %vm475 = vcmp.eq.s32.totalorder %v68, 1
  %vm476 = vcmp.eq.s32.totalorder %v69, 1
  %v477 = vsel %vm451, 1, 0
  %v478 = vsel %vm452, 1, 0
  %v479 = vsel %vm453, 1, 0
  %v480 = vsel %vm454, 1, 0
  %v481 = vsel %vm455, 1, 0
  %v482 = vsel %vm456, 1, 0
  %v483 = vsel %vm457, 1, 0
  %v484 = vsel %vm458, 1, 0
  %v485 = vsel %vm459, 1, 0
  %v486 = vsel %vm460, 1, 0
  %v487 = vsel %vm461, 1, 0
  %v488 = vsel %vm462, 1, 0
  %v489 = vsel %vm463, 1, 0
  %v490 = vsel %vm464, 1, 0
  %v491 = vsel %vm465, 1, 0
  %v492 = vsel %vm466, 1, 0
  %v493 = vsel %vm467, 1, 0
  %v494 = vsel %vm468, 1, 0
  %v495 = vsel %vm469, 1, 0
  %v496 = vsel %vm470, 1, 0
  %v497 = vsel %vm471, 1, 0
  %v498 = vsel %vm472, 1, 0
  %v499 = vsel %vm473, 1, 0
  %v500 = vsel %vm474, 1, 0
  %v501 = vsel %vm475, 1, 0
  %v502 = vsel %vm476, 1, 0
  %503 = vset.pattern.permute.xlu0 0
  %504 = vperm.xlu0 %503, %v477
  %v505 = vpop.permute.xlu0 %504
  %506 = vset.pattern.permute.xlu0 0
  %507 = vperm.xlu0 %506, %v478
  %v508 = vpop.permute.xlu0 %507
  %509 = vset.pattern.permute.xlu0 0
  %510 = vperm.xlu0 %509, %v479
  %v511 = vpop.permute.xlu0 %510
  %512 = vset.pattern.permute.xlu0 0
  %513 = vperm.xlu0 %512, %v480
  %v514 = vpop.permute.xlu0 %513
  %515 = vset.pattern.permute.xlu0 0
  %516 = vperm.xlu0 %515, %v481
  %v517 = vpop.permute.xlu0 %516
  %518 = vset.pattern.permute.xlu0 0
  %519 = vperm.xlu0 %518, %v482
  %v520 = vpop.permute.xlu0 %519
  %521 = vset.pattern.permute.xlu0 0
  %522 = vperm.xlu0 %521, %v483
  %v523 = vpop.permute.xlu0 %522
  %524 = vset.pattern.permute.xlu0 0
  %525 = vperm.xlu0 %524, %v484
  %v526 = vpop.permute.xlu0 %525
  %527 = vset.pattern.permute.xlu0 0
  %528 = vperm.xlu0 %527, %v485
  %v529 = vpop.permute.xlu0 %528
  %530 = vset.pattern.permute.xlu0 0
  %531 = vperm.xlu0 %530, %v486
  %v532 = vpop.permute.xlu0 %531
  %533 = vset.pattern.permute.xlu0 0
  %534 = vperm.xlu0 %533, %v487
  %v535 = vpop.permute.xlu0 %534
  %536 = vset.pattern.permute.xlu0 0
  %537 = vperm.xlu0 %536, %v488
  %v538 = vpop.permute.xlu0 %537
  %539 = vset.pattern.permute.xlu0 0
  %540 = vperm.xlu0 %539, %v489
  %v541 = vpop.permute.xlu0 %540
  %542 = vset.pattern.permute.xlu0 0
  %543 = vperm.xlu0 %542, %v490
  %v544 = vpop.permute.xlu0 %543
  %545 = vset.pattern.permute.xlu0 0
  %546 = vperm.xlu0 %545, %v491
  %v547 = vpop.permute.xlu0 %546
  %548 = vset.pattern.permute.xlu0 0
  %549 = vperm.xlu0 %548, %v492
  %v550 = vpop.permute.xlu0 %549
  %551 = vset.pattern.permute.xlu0 0
  %552 = vperm.xlu0 %551, %v493
  %v553 = vpop.permute.xlu0 %552
  %554 = vset.pattern.permute.xlu0 0
  %555 = vperm.xlu0 %554, %v494
  %v556 = vpop.permute.xlu0 %555
  %557 = vset.pattern.permute.xlu0 0
  %558 = vperm.xlu0 %557, %v495
  %v559 = vpop.permute.xlu0 %558
  %560 = vset.pattern.permute.xlu0 0
  %561 = vperm.xlu0 %560, %v496
  %v562 = vpop.permute.xlu0 %561
  %563 = vset.pattern.permute.xlu0 0
  %564 = vperm.xlu0 %563, %v497
  %v565 = vpop.permute.xlu0 %564
  %566 = vset.pattern.permute.xlu0 0
  %567 = vperm.xlu0 %566, %v498
  %v568 = vpop.permute.xlu0 %567
  %569 = vset.pattern.permute.xlu0 0
  %570 = vperm.xlu0 %569, %v499
  %v571 = vpop.permute.xlu0 %570
  %572 = vset.pattern.permute.xlu0 0
  %573 = vperm.xlu0 %572, %v500
  %v574 = vpop.permute.xlu0 %573
  %575 = vset.pattern.permute.xlu0 0
  %576 = vperm.xlu0 %575, %v501
  %v577 = vpop.permute.xlu0 %576
  %578 = vset.pattern.permute.xlu0 0
  %579 = vperm.xlu0 %578, %v502
  %v580 = vpop.permute.xlu0 %579
  %vm581 = vcmp.eq.s32.totalorder %v505, 1
  %vm582 = vcmp.eq.s32.totalorder %v508, 1
  %vm583 = vcmp.eq.s32.totalorder %v511, 1
  %vm584 = vcmp.eq.s32.totalorder %v514, 1
  %vm585 = vcmp.eq.s32.totalorder %v517, 1
  %vm586 = vcmp.eq.s32.totalorder %v520, 1
  %vm587 = vcmp.eq.s32.totalorder %v523, 1
  %vm588 = vcmp.eq.s32.totalorder %v526, 1
  %vm589 = vcmp.eq.s32.totalorder %v529, 1
  %vm590 = vcmp.eq.s32.totalorder %v532, 1
  %vm591 = vcmp.eq.s32.totalorder %v535, 1
  %vm592 = vcmp.eq.s32.totalorder %v538, 1
  %vm593 = vcmp.eq.s32.totalorder %v541, 1
  %vm594 = vcmp.eq.s32.totalorder %v544, 1
  %vm595 = vcmp.eq.s32.totalorder %v547, 1
  %vm596 = vcmp.eq.s32.totalorder %v550, 1
  %vm597 = vcmp.eq.s32.totalorder %v553, 1
  %vm598 = vcmp.eq.s32.totalorder %v556, 1
  %vm599 = vcmp.eq.s32.totalorder %v559, 1
  %vm600 = vcmp.eq.s32.totalorder %v562, 1
  %vm601 = vcmp.eq.s32.totalorder %v565, 1
  %vm602 = vcmp.eq.s32.totalorder %v568, 1
  %vm603 = vcmp.eq.s32.totalorder %v571, 1
  %vm604 = vcmp.eq.s32.totalorder %v574, 1
  %vm605 = vcmp.eq.s32.totalorder %v577, 1
  %vm606 = vcmp.eq.s32.totalorder %v580, 1
  %633 = vrot.lane.b32.xlu0 %v425, 32
  %v634 = vpop.permute.xlu0 %633
  %635 = vrot.lane.b32.xlu0 %v426, 32
  %v636 = vpop.permute.xlu0 %635
  %637 = vrot.lane.b32.xlu0 %v427, 32
  %v638 = vpop.permute.xlu0 %637
  %639 = vrot.lane.b32.xlu0 %v428, 32
  %v640 = vpop.permute.xlu0 %639
  %641 = vrot.lane.b32.xlu0 %v429, 32
  %v642 = vpop.permute.xlu0 %641
  %643 = vrot.lane.b32.xlu0 %v430, 32
  %v644 = vpop.permute.xlu0 %643
  %645 = vrot.lane.b32.xlu0 %v431, 32
  %v646 = vpop.permute.xlu0 %645
  %647 = vrot.lane.b32.xlu0 %v432, 32
  %v648 = vpop.permute.xlu0 %647
  %649 = vrot.lane.b32.xlu0 %v433, 32
  %v650 = vpop.permute.xlu0 %649
  %651 = vrot.lane.b32.xlu0 %v434, 32
  %v652 = vpop.permute.xlu0 %651
  %653 = vrot.lane.b32.xlu0 %v435, 32
  %v654 = vpop.permute.xlu0 %653
  %655 = vrot.lane.b32.xlu0 %v436, 32
  %v656 = vpop.permute.xlu0 %655
  %657 = vrot.lane.b32.xlu0 %v437, 32
  %v658 = vpop.permute.xlu0 %657
  %659 = vrot.lane.b32.xlu0 %v438, 32
  %v660 = vpop.permute.xlu0 %659
  %661 = vrot.lane.b32.xlu0 %v439, 32
  %v662 = vpop.permute.xlu0 %661
  %663 = vrot.lane.b32.xlu0 %v440, 32
  %v664 = vpop.permute.xlu0 %663
  %665 = vrot.lane.b32.xlu0 %v441, 32
  %v666 = vpop.permute.xlu0 %665
  %667 = vrot.lane.b32.xlu0 %v442, 32
  %v668 = vpop.permute.xlu0 %667
  %669 = vrot.lane.b32.xlu0 %v443, 32
  %v670 = vpop.permute.xlu0 %669
  %671 = vrot.lane.b32.xlu0 %v444, 32
  %v672 = vpop.permute.xlu0 %671
  %673 = vrot.lane.b32.xlu0 %v445, 32
  %v674 = vpop.permute.xlu0 %673
  %675 = vrot.lane.b32.xlu0 %v446, 32
  %v676 = vpop.permute.xlu0 %675
  %677 = vrot.lane.b32.xlu0 %v447, 32
  %v678 = vpop.permute.xlu0 %677
  %679 = vrot.lane.b32.xlu0 %v448, 32
  %v680 = vpop.permute.xlu0 %679
  %681 = vrot.lane.b32.xlu0 %v449, 32
  %v682 = vpop.permute.xlu0 %681
  %683 = vrot.lane.b32.xlu0 %v450, 32
  %v684 = vpop.permute.xlu0 %683
  %v711 = vsel %vm581, %v205, %v634
  %v712 = vsel %vm582, %v207, %v636
  %v713 = vsel %vm583, %v210, %v638
  %v714 = vsel %vm584, %v212, %v640
  %v715 = vsel %vm585, %v215, %v642
  %v716 = vsel %vm586, %v217, %v644
  %v717 = vsel %vm587, %v220, %v646
  %v718 = vsel %vm588, %v222, %v648
  %v719 = vsel %vm589, %v225, %v650
  %v720 = vsel %vm590, %v227, %v652
  %v721 = vsel %vm591, %v230, %v654
  %v722 = vsel %vm592, %v232, %v656
  %v723 = vsel %vm593, %v235, %v658
  %v724 = vsel %vm594, %v237, %v660
  %v725 = vsel %vm595, %v240, %v662
  %v726 = vsel %vm596, %v242, %v664
  %v727 = vsel %vm597, %v245, %v666
  %v728 = vsel %vm598, %v247, %v668
  %v729 = vsel %vm599, %v250, %v670
  %v730 = vsel %vm600, %v252, %v672
  %v731 = vsel %vm601, %v255, %v674
  %v732 = vsel %vm602, %v257, %v676
  %v733 = vsel %vm603, %v260, %v678
  %v734 = vsel %vm604, %v262, %v680
  %v735 = vsel %vm605, %v265, %v682
  %v736 = vsel %vm606, %v267, %v684
  %vm737 = vcmp.eq.s32.totalorder %v44, 2
  %vm738 = vcmp.eq.s32.totalorder %v45, 2
  %vm739 = vcmp.eq.s32.totalorder %v46, 2
  %vm740 = vcmp.eq.s32.totalorder %v47, 2
  %vm741 = vcmp.eq.s32.totalorder %v48, 2
  %vm742 = vcmp.eq.s32.totalorder %v49, 2
  %vm743 = vcmp.eq.s32.totalorder %v50, 2
  %vm744 = vcmp.eq.s32.totalorder %v51, 2
  %vm745 = vcmp.eq.s32.totalorder %v52, 2
  %vm746 = vcmp.eq.s32.totalorder %v53, 2
  %vm747 = vcmp.eq.s32.totalorder %v54, 2
  %vm748 = vcmp.eq.s32.totalorder %v55, 2
  %vm749 = vcmp.eq.s32.totalorder %v56, 2
  %vm750 = vcmp.eq.s32.totalorder %v57, 2
  %vm751 = vcmp.eq.s32.totalorder %v58, 2
  %vm752 = vcmp.eq.s32.totalorder %v59, 2
  %vm753 = vcmp.eq.s32.totalorder %v60, 2
  %vm754 = vcmp.eq.s32.totalorder %v61, 2
  %vm755 = vcmp.eq.s32.totalorder %v62, 2
  %vm756 = vcmp.eq.s32.totalorder %v63, 2
  %vm757 = vcmp.eq.s32.totalorder %v64, 2
  %vm758 = vcmp.eq.s32.totalorder %v65, 2
  %vm759 = vcmp.eq.s32.totalorder %v66, 2
  %vm760 = vcmp.eq.s32.totalorder %v67, 2
  %vm761 = vcmp.eq.s32.totalorder %v68, 2
  %vm762 = vcmp.eq.s32.totalorder %v69, 2
  %v763 = vsel %vm737, 1, 0
  %v764 = vsel %vm738, 1, 0
  %v765 = vsel %vm739, 1, 0
  %v766 = vsel %vm740, 1, 0
  %v767 = vsel %vm741, 1, 0
  %v768 = vsel %vm742, 1, 0
  %v769 = vsel %vm743, 1, 0
  %v770 = vsel %vm744, 1, 0
  %v771 = vsel %vm745, 1, 0
  %v772 = vsel %vm746, 1, 0
  %v773 = vsel %vm747, 1, 0
  %v774 = vsel %vm748, 1, 0
  %v775 = vsel %vm749, 1, 0
  %v776 = vsel %vm750, 1, 0
  %v777 = vsel %vm751, 1, 0
  %v778 = vsel %vm752, 1, 0
  %v779 = vsel %vm753, 1, 0
  %v780 = vsel %vm754, 1, 0
  %v781 = vsel %vm755, 1, 0
  %v782 = vsel %vm756, 1, 0
  %v783 = vsel %vm757, 1, 0
  %v784 = vsel %vm758, 1, 0
  %v785 = vsel %vm759, 1, 0
  %v786 = vsel %vm760, 1, 0
  %v787 = vsel %vm761, 1, 0
  %v788 = vsel %vm762, 1, 0
  %789 = vset.pattern.permute.xlu0 0
  %790 = vperm.xlu0 %789, %v763
  %v791 = vpop.permute.xlu0 %790
  %792 = vset.pattern.permute.xlu0 0
  %793 = vperm.xlu0 %792, %v764
  %v794 = vpop.permute.xlu0 %793
  %795 = vset.pattern.permute.xlu0 0
  %796 = vperm.xlu0 %795, %v765
  %v797 = vpop.permute.xlu0 %796
  %798 = vset.pattern.permute.xlu0 0
  %799 = vperm.xlu0 %798, %v766
  %v800 = vpop.permute.xlu0 %799
  %801 = vset.pattern.permute.xlu0 0
  %802 = vperm.xlu0 %801, %v767
  %v803 = vpop.permute.xlu0 %802
  %804 = vset.pattern.permute.xlu0 0
  %805 = vperm.xlu0 %804, %v768
  %v806 = vpop.permute.xlu0 %805
  %807 = vset.pattern.permute.xlu0 0
  %808 = vperm.xlu0 %807, %v769
  %v809 = vpop.permute.xlu0 %808
  %810 = vset.pattern.permute.xlu0 0
  %811 = vperm.xlu0 %810, %v770
  %v812 = vpop.permute.xlu0 %811
  %813 = vset.pattern.permute.xlu0 0
  %814 = vperm.xlu0 %813, %v771
  %v815 = vpop.permute.xlu0 %814
  %816 = vset.pattern.permute.xlu0 0
  %817 = vperm.xlu0 %816, %v772
  %v818 = vpop.permute.xlu0 %817
  %819 = vset.pattern.permute.xlu0 0
  %820 = vperm.xlu0 %819, %v773
  %v821 = vpop.permute.xlu0 %820
  %822 = vset.pattern.permute.xlu0 0
  %823 = vperm.xlu0 %822, %v774
  %v824 = vpop.permute.xlu0 %823
  %825 = vset.pattern.permute.xlu0 0
  %826 = vperm.xlu0 %825, %v775
  %v827 = vpop.permute.xlu0 %826
  %828 = vset.pattern.permute.xlu0 0
  %829 = vperm.xlu0 %828, %v776
  %v830 = vpop.permute.xlu0 %829
  %831 = vset.pattern.permute.xlu0 0
  %832 = vperm.xlu0 %831, %v777
  %v833 = vpop.permute.xlu0 %832
  %834 = vset.pattern.permute.xlu0 0
  %835 = vperm.xlu0 %834, %v778
  %v836 = vpop.permute.xlu0 %835
  %837 = vset.pattern.permute.xlu0 0
  %838 = vperm.xlu0 %837, %v779
  %v839 = vpop.permute.xlu0 %838
  %840 = vset.pattern.permute.xlu0 0
  %841 = vperm.xlu0 %840, %v780
  %v842 = vpop.permute.xlu0 %841
  %843 = vset.pattern.permute.xlu0 0
  %844 = vperm.xlu0 %843, %v781
  %v845 = vpop.permute.xlu0 %844
  %846 = vset.pattern.permute.xlu0 0
  %847 = vperm.xlu0 %846, %v782
  %v848 = vpop.permute.xlu0 %847
  %849 = vset.pattern.permute.xlu0 0
  %850 = vperm.xlu0 %849, %v783
  %v851 = vpop.permute.xlu0 %850
  %852 = vset.pattern.permute.xlu0 0
  %853 = vperm.xlu0 %852, %v784
  %v854 = vpop.permute.xlu0 %853
  %855 = vset.pattern.permute.xlu0 0
  %856 = vperm.xlu0 %855, %v785
  %v857 = vpop.permute.xlu0 %856
  %858 = vset.pattern.permute.xlu0 0
  %859 = vperm.xlu0 %858, %v786
  %v860 = vpop.permute.xlu0 %859
  %861 = vset.pattern.permute.xlu0 0
  %862 = vperm.xlu0 %861, %v787
  %v863 = vpop.permute.xlu0 %862
  %864 = vset.pattern.permute.xlu0 0
  %865 = vperm.xlu0 %864, %v788
  %v866 = vpop.permute.xlu0 %865
  %vm867 = vcmp.eq.s32.totalorder %v791, 1
  %vm868 = vcmp.eq.s32.totalorder %v794, 1
  %vm869 = vcmp.eq.s32.totalorder %v797, 1
  %vm870 = vcmp.eq.s32.totalorder %v800, 1
  %vm871 = vcmp.eq.s32.totalorder %v803, 1
  %vm872 = vcmp.eq.s32.totalorder %v806, 1
  %vm873 = vcmp.eq.s32.totalorder %v809, 1
  %vm874 = vcmp.eq.s32.totalorder %v812, 1
  %vm875 = vcmp.eq.s32.totalorder %v815, 1
  %vm876 = vcmp.eq.s32.totalorder %v818, 1
  %vm877 = vcmp.eq.s32.totalorder %v821, 1
  %vm878 = vcmp.eq.s32.totalorder %v824, 1
  %vm879 = vcmp.eq.s32.totalorder %v827, 1
  %vm880 = vcmp.eq.s32.totalorder %v830, 1
  %vm881 = vcmp.eq.s32.totalorder %v833, 1
  %vm882 = vcmp.eq.s32.totalorder %v836, 1
  %vm883 = vcmp.eq.s32.totalorder %v839, 1
  %vm884 = vcmp.eq.s32.totalorder %v842, 1
  %vm885 = vcmp.eq.s32.totalorder %v845, 1
  %vm886 = vcmp.eq.s32.totalorder %v848, 1
  %vm887 = vcmp.eq.s32.totalorder %v851, 1
  %vm888 = vcmp.eq.s32.totalorder %v854, 1
  %vm889 = vcmp.eq.s32.totalorder %v857, 1
  %vm890 = vcmp.eq.s32.totalorder %v860, 1
  %vm891 = vcmp.eq.s32.totalorder %v863, 1
  %vm892 = vcmp.eq.s32.totalorder %v866, 1
  %919 = vrot.lane.b32.xlu0 %v711, 32
  %v920 = vpop.permute.xlu0 %919
  %921 = vrot.lane.b32.xlu0 %v712, 32
  %v922 = vpop.permute.xlu0 %921
  %923 = vrot.lane.b32.xlu0 %v713, 32
  %v924 = vpop.permute.xlu0 %923
  %925 = vrot.lane.b32.xlu0 %v714, 32
  %v926 = vpop.permute.xlu0 %925
  %927 = vrot.lane.b32.xlu0 %v715, 32
  %v928 = vpop.permute.xlu0 %927
  %929 = vrot.lane.b32.xlu0 %v716, 32
  %v930 = vpop.permute.xlu0 %929
  %931 = vrot.lane.b32.xlu0 %v717, 32
  %v932 = vpop.permute.xlu0 %931
  %933 = vrot.lane.b32.xlu0 %v718, 32
  %v934 = vpop.permute.xlu0 %933
  %935 = vrot.lane.b32.xlu0 %v719, 32
  %v936 = vpop.permute.xlu0 %935
  %937 = vrot.lane.b32.xlu0 %v720, 32
  %v938 = vpop.permute.xlu0 %937
  %939 = vrot.lane.b32.xlu0 %v721, 32
  %v940 = vpop.permute.xlu0 %939
  %941 = vrot.lane.b32.xlu0 %v722, 32
  %v942 = vpop.permute.xlu0 %941
  %943 = vrot.lane.b32.xlu0 %v723, 32
  %v944 = vpop.permute.xlu0 %943
  %945 = vrot.lane.b32.xlu0 %v724, 32
  %v946 = vpop.permute.xlu0 %945
  %947 = vrot.lane.b32.xlu0 %v725, 32
  %v948 = vpop.permute.xlu0 %947
  %949 = vrot.lane.b32.xlu0 %v726, 32
  %v950 = vpop.permute.xlu0 %949
  %951 = vrot.lane.b32.xlu0 %v727, 32
  %v952 = vpop.permute.xlu0 %951
  %953 = vrot.lane.b32.xlu0 %v728, 32
  %v954 = vpop.permute.xlu0 %953
  %955 = vrot.lane.b32.xlu0 %v729, 32
  %v956 = vpop.permute.xlu0 %955
  %957 = vrot.lane.b32.xlu0 %v730, 32
  %v958 = vpop.permute.xlu0 %957
  %959 = vrot.lane.b32.xlu0 %v731, 32
  %v960 = vpop.permute.xlu0 %959
  %961 = vrot.lane.b32.xlu0 %v732, 32
  %v962 = vpop.permute.xlu0 %961
  %963 = vrot.lane.b32.xlu0 %v733, 32
  %v964 = vpop.permute.xlu0 %963
  %965 = vrot.lane.b32.xlu0 %v734, 32
  %v966 = vpop.permute.xlu0 %965
  %967 = vrot.lane.b32.xlu0 %v735, 32
  %v968 = vpop.permute.xlu0 %967
  %969 = vrot.lane.b32.xlu0 %v736, 32
  %v970 = vpop.permute.xlu0 %969
  %v997 = vsel %vm867, %v205, %v920
  %v998 = vsel %vm868, %v207, %v922
  %v999 = vsel %vm869, %v210, %v924
  %v1000 = vsel %vm870, %v212, %v926
  %v1001 = vsel %vm871, %v215, %v928
  %v1002 = vsel %vm872, %v217, %v930
  %v1003 = vsel %vm873, %v220, %v932
  %v1004 = vsel %vm874, %v222, %v934
  %v1005 = vsel %vm875, %v225, %v936
  %v1006 = vsel %vm876, %v227, %v938
  %v1007 = vsel %vm877, %v230, %v940
  %v1008 = vsel %vm878, %v232, %v942
  %v1009 = vsel %vm879, %v235, %v944
  %v1010 = vsel %vm880, %v237, %v946
  %v1011 = vsel %vm881, %v240, %v948
  %v1012 = vsel %vm882, %v242, %v950
  %v1013 = vsel %vm883, %v245, %v952
  %v1014 = vsel %vm884, %v247, %v954
  %v1015 = vsel %vm885, %v250, %v956
  %v1016 = vsel %vm886, %v252, %v958
  %v1017 = vsel %vm887, %v255, %v960
  %v1018 = vsel %vm888, %v257, %v962
  %v1019 = vsel %vm889, %v260, %v964
  %v1020 = vsel %vm890, %v262, %v966
  %v1021 = vsel %vm891, %v265, %v968
  %v1022 = vsel %vm892, %v267, %v970
  %vm1023 = vcmp.eq.s32.totalorder %v44, 3
  %vm1024 = vcmp.eq.s32.totalorder %v45, 3
  %vm1025 = vcmp.eq.s32.totalorder %v46, 3
  %vm1026 = vcmp.eq.s32.totalorder %v47, 3
  %vm1027 = vcmp.eq.s32.totalorder %v48, 3
  %vm1028 = vcmp.eq.s32.totalorder %v49, 3
  %vm1029 = vcmp.eq.s32.totalorder %v50, 3
  %vm1030 = vcmp.eq.s32.totalorder %v51, 3
  %vm1031 = vcmp.eq.s32.totalorder %v52, 3
  %vm1032 = vcmp.eq.s32.totalorder %v53, 3
  %vm1033 = vcmp.eq.s32.totalorder %v54, 3
  %vm1034 = vcmp.eq.s32.totalorder %v55, 3
  %vm1035 = vcmp.eq.s32.totalorder %v56, 3
  %vm1036 = vcmp.eq.s32.totalorder %v57, 3
  %vm1037 = vcmp.eq.s32.totalorder %v58, 3
  %vm1038 = vcmp.eq.s32.totalorder %v59, 3
  %vm1039 = vcmp.eq.s32.totalorder %v60, 3
  %vm1040 = vcmp.eq.s32.totalorder %v61, 3
  %vm1041 = vcmp.eq.s32.totalorder %v62, 3
  %vm1042 = vcmp.eq.s32.totalorder %v63, 3
  %vm1043 = vcmp.eq.s32.totalorder %v64, 3
  %vm1044 = vcmp.eq.s32.totalorder %v65, 3
  %vm1045 = vcmp.eq.s32.totalorder %v66, 3
  %vm1046 = vcmp.eq.s32.totalorder %v67, 3
  %vm1047 = vcmp.eq.s32.totalorder %v68, 3
  %vm1048 = vcmp.eq.s32.totalorder %v69, 3
  %v1049 = vsel %vm1023, 1, 0
  %v1050 = vsel %vm1024, 1, 0
  %v1051 = vsel %vm1025, 1, 0
  %v1052 = vsel %vm1026, 1, 0
  %v1053 = vsel %vm1027, 1, 0
  %v1054 = vsel %vm1028, 1, 0
  %v1055 = vsel %vm1029, 1, 0
  %v1056 = vsel %vm1030, 1, 0
  %v1057 = vsel %vm1031, 1, 0
  %v1058 = vsel %vm1032, 1, 0
  %v1059 = vsel %vm1033, 1, 0
  %v1060 = vsel %vm1034, 1, 0
  %v1061 = vsel %vm1035, 1, 0
  %v1062 = vsel %vm1036, 1, 0
  %v1063 = vsel %vm1037, 1, 0
  %v1064 = vsel %vm1038, 1, 0
  %v1065 = vsel %vm1039, 1, 0
  %v1066 = vsel %vm1040, 1, 0
  %v1067 = vsel %vm1041, 1, 0
  %v1068 = vsel %vm1042, 1, 0
  %v1069 = vsel %vm1043, 1, 0
  %v1070 = vsel %vm1044, 1, 0
  %v1071 = vsel %vm1045, 1, 0
  %v1072 = vsel %vm1046, 1, 0
  %v1073 = vsel %vm1047, 1, 0
  %v1074 = vsel %vm1048, 1, 0
  %1075 = vset.pattern.permute.xlu0 0
  %1076 = vperm.xlu0 %1075, %v1049
  %v1077 = vpop.permute.xlu0 %1076
  %1078 = vset.pattern.permute.xlu0 0
  %1079 = vperm.xlu0 %1078, %v1050
  %v1080 = vpop.permute.xlu0 %1079
  %1081 = vset.pattern.permute.xlu0 0
  %1082 = vperm.xlu0 %1081, %v1051
  %v1083 = vpop.permute.xlu0 %1082
  %1084 = vset.pattern.permute.xlu0 0
  %1085 = vperm.xlu0 %1084, %v1052
  %v1086 = vpop.permute.xlu0 %1085
  %1087 = vset.pattern.permute.xlu0 0
  %1088 = vperm.xlu0 %1087, %v1053
  %v1089 = vpop.permute.xlu0 %1088
  %1090 = vset.pattern.permute.xlu0 0
  %1091 = vperm.xlu0 %1090, %v1054
  %v1092 = vpop.permute.xlu0 %1091
  %1093 = vset.pattern.permute.xlu0 0
  %1094 = vperm.xlu0 %1093, %v1055
  %v1095 = vpop.permute.xlu0 %1094
  %1096 = vset.pattern.permute.xlu0 0
  %1097 = vperm.xlu0 %1096, %v1056
  %v1098 = vpop.permute.xlu0 %1097
  %1099 = vset.pattern.permute.xlu0 0
  %1100 = vperm.xlu0 %1099, %v1057
  %v1101 = vpop.permute.xlu0 %1100
  %1102 = vset.pattern.permute.xlu0 0
  %1103 = vperm.xlu0 %1102, %v1058
  %v1104 = vpop.permute.xlu0 %1103
  %1105 = vset.pattern.permute.xlu0 0
  %1106 = vperm.xlu0 %1105, %v1059
  %v1107 = vpop.permute.xlu0 %1106
  %1108 = vset.pattern.permute.xlu0 0
  %1109 = vperm.xlu0 %1108, %v1060
  %v1110 = vpop.permute.xlu0 %1109
  %1111 = vset.pattern.permute.xlu0 0
  %1112 = vperm.xlu0 %1111, %v1061
  %v1113 = vpop.permute.xlu0 %1112
  %1114 = vset.pattern.permute.xlu0 0
  %1115 = vperm.xlu0 %1114, %v1062
  %v1116 = vpop.permute.xlu0 %1115
  %1117 = vset.pattern.permute.xlu0 0
  %1118 = vperm.xlu0 %1117, %v1063
  %v1119 = vpop.permute.xlu0 %1118
  %1120 = vset.pattern.permute.xlu0 0
  %1121 = vperm.xlu0 %1120, %v1064
  %v1122 = vpop.permute.xlu0 %1121
  %1123 = vset.pattern.permute.xlu0 0
  %1124 = vperm.xlu0 %1123, %v1065
  %v1125 = vpop.permute.xlu0 %1124
  %1126 = vset.pattern.permute.xlu0 0
  %1127 = vperm.xlu0 %1126, %v1066
  %v1128 = vpop.permute.xlu0 %1127
  %1129 = vset.pattern.permute.xlu0 0
  %1130 = vperm.xlu0 %1129, %v1067
  %v1131 = vpop.permute.xlu0 %1130
  %1132 = vset.pattern.permute.xlu0 0
  %1133 = vperm.xlu0 %1132, %v1068
  %v1134 = vpop.permute.xlu0 %1133
  %1135 = vset.pattern.permute.xlu0 0
  %1136 = vperm.xlu0 %1135, %v1069
  %v1137 = vpop.permute.xlu0 %1136
  %1138 = vset.pattern.permute.xlu0 0
  %1139 = vperm.xlu0 %1138, %v1070
  %v1140 = vpop.permute.xlu0 %1139
  %1141 = vset.pattern.permute.xlu0 0
  %1142 = vperm.xlu0 %1141, %v1071
  %v1143 = vpop.permute.xlu0 %1142
  %1144 = vset.pattern.permute.xlu0 0
  %1145 = vperm.xlu0 %1144, %v1072
  %v1146 = vpop.permute.xlu0 %1145
  %1147 = vset.pattern.permute.xlu0 0
  %1148 = vperm.xlu0 %1147, %v1073
  %v1149 = vpop.permute.xlu0 %1148
  %1150 = vset.pattern.permute.xlu0 0
  %1151 = vperm.xlu0 %1150, %v1074
  %v1152 = vpop.permute.xlu0 %1151
  %vm1153 = vcmp.eq.s32.totalorder %v1077, 1
  %vm1154 = vcmp.eq.s32.totalorder %v1080, 1
  %vm1155 = vcmp.eq.s32.totalorder %v1083, 1
  %vm1156 = vcmp.eq.s32.totalorder %v1086, 1
  %vm1157 = vcmp.eq.s32.totalorder %v1089, 1
  %vm1158 = vcmp.eq.s32.totalorder %v1092, 1
  %vm1159 = vcmp.eq.s32.totalorder %v1095, 1
  %vm1160 = vcmp.eq.s32.totalorder %v1098, 1
  %vm1161 = vcmp.eq.s32.totalorder %v1101, 1
  %vm1162 = vcmp.eq.s32.totalorder %v1104, 1
  %vm1163 = vcmp.eq.s32.totalorder %v1107, 1
  %vm1164 = vcmp.eq.s32.totalorder %v1110, 1
  %vm1165 = vcmp.eq.s32.totalorder %v1113, 1
  %vm1166 = vcmp.eq.s32.totalorder %v1116, 1
  %vm1167 = vcmp.eq.s32.totalorder %v1119, 1
  %vm1168 = vcmp.eq.s32.totalorder %v1122, 1
  %vm1169 = vcmp.eq.s32.totalorder %v1125, 1
  %vm1170 = vcmp.eq.s32.totalorder %v1128, 1
  %vm1171 = vcmp.eq.s32.totalorder %v1131, 1
  %vm1172 = vcmp.eq.s32.totalorder %v1134, 1
  %vm1173 = vcmp.eq.s32.totalorder %v1137, 1
  %vm1174 = vcmp.eq.s32.totalorder %v1140, 1
  %vm1175 = vcmp.eq.s32.totalorder %v1143, 1
  %vm1176 = vcmp.eq.s32.totalorder %v1146, 1
  %vm1177 = vcmp.eq.s32.totalorder %v1149, 1
  %vm1178 = vcmp.eq.s32.totalorder %v1152, 1
  %1205 = vrot.lane.b32.xlu0 %v997, 32
  %v1206 = vpop.permute.xlu0 %1205
  %1207 = vrot.lane.b32.xlu0 %v998, 32
  %v1208 = vpop.permute.xlu0 %1207
  %1209 = vrot.lane.b32.xlu0 %v999, 32
  %v1210 = vpop.permute.xlu0 %1209
  %1211 = vrot.lane.b32.xlu0 %v1000, 32
  %v1212 = vpop.permute.xlu0 %1211
  %1213 = vrot.lane.b32.xlu0 %v1001, 32
  %v1214 = vpop.permute.xlu0 %1213
  %1215 = vrot.lane.b32.xlu0 %v1002, 32
  %v1216 = vpop.permute.xlu0 %1215
  %1217 = vrot.lane.b32.xlu0 %v1003, 32
  %v1218 = vpop.permute.xlu0 %1217
  %1219 = vrot.lane.b32.xlu0 %v1004, 32
  %v1220 = vpop.permute.xlu0 %1219
  %1221 = vrot.lane.b32.xlu0 %v1005, 32
  %v1222 = vpop.permute.xlu0 %1221
  %1223 = vrot.lane.b32.xlu0 %v1006, 32
  %v1224 = vpop.permute.xlu0 %1223
  %1225 = vrot.lane.b32.xlu0 %v1007, 32
  %v1226 = vpop.permute.xlu0 %1225
  %1227 = vrot.lane.b32.xlu0 %v1008, 32
  %v1228 = vpop.permute.xlu0 %1227
  %1229 = vrot.lane.b32.xlu0 %v1009, 32
  %v1230 = vpop.permute.xlu0 %1229
  %1231 = vrot.lane.b32.xlu0 %v1010, 32
  %v1232 = vpop.permute.xlu0 %1231
  %1233 = vrot.lane.b32.xlu0 %v1011, 32
  %v1234 = vpop.permute.xlu0 %1233
  %1235 = vrot.lane.b32.xlu0 %v1012, 32
  %v1236 = vpop.permute.xlu0 %1235
  %1237 = vrot.lane.b32.xlu0 %v1013, 32
  %v1238 = vpop.permute.xlu0 %1237
  %1239 = vrot.lane.b32.xlu0 %v1014, 32
  %v1240 = vpop.permute.xlu0 %1239
  %1241 = vrot.lane.b32.xlu0 %v1015, 32
  %v1242 = vpop.permute.xlu0 %1241
  %1243 = vrot.lane.b32.xlu0 %v1016, 32
  %v1244 = vpop.permute.xlu0 %1243
  %1245 = vrot.lane.b32.xlu0 %v1017, 32
  %v1246 = vpop.permute.xlu0 %1245
  %1247 = vrot.lane.b32.xlu0 %v1018, 32
  %v1248 = vpop.permute.xlu0 %1247
  %1249 = vrot.lane.b32.xlu0 %v1019, 32
  %v1250 = vpop.permute.xlu0 %1249
  %1251 = vrot.lane.b32.xlu0 %v1020, 32
  %v1252 = vpop.permute.xlu0 %1251
  %1253 = vrot.lane.b32.xlu0 %v1021, 32
  %v1254 = vpop.permute.xlu0 %1253
  %1255 = vrot.lane.b32.xlu0 %v1022, 32
  %v1256 = vpop.permute.xlu0 %1255
  %v1283 = vsel %vm1153, %v205, %v1206
  %v1284 = vsel %vm1154, %v207, %v1208
  %v1285 = vsel %vm1155, %v210, %v1210
  %v1286 = vsel %vm1156, %v212, %v1212
  %v1287 = vsel %vm1157, %v215, %v1214
  %v1288 = vsel %vm1158, %v217, %v1216
  %v1289 = vsel %vm1159, %v220, %v1218
  %v1290 = vsel %vm1160, %v222, %v1220
  %v1291 = vsel %vm1161, %v225, %v1222
  %v1292 = vsel %vm1162, %v227, %v1224
  %v1293 = vsel %vm1163, %v230, %v1226
  %v1294 = vsel %vm1164, %v232, %v1228
  %v1295 = vsel %vm1165, %v235, %v1230
  %v1296 = vsel %vm1166, %v237, %v1232
  %v1297 = vsel %vm1167, %v240, %v1234
  %v1298 = vsel %vm1168, %v242, %v1236
  %v1299 = vsel %vm1169, %v245, %v1238
  %v1300 = vsel %vm1170, %v247, %v1240
  %v1301 = vsel %vm1171, %v250, %v1242
  %v1302 = vsel %vm1172, %v252, %v1244
  %v1303 = vsel %vm1173, %v255, %v1246
  %v1304 = vsel %vm1174, %v257, %v1248
  %v1305 = vsel %vm1175, %v260, %v1250
  %v1306 = vsel %vm1176, %v262, %v1252
  %v1307 = vsel %vm1177, %v265, %v1254
  %v1308 = vsel %vm1178, %v267, %v1256
  %v1309 = vtanh.pop %v1283
  %v1310 = vtanh.pop %v1284
  %v1311 = vtanh.pop %v1285
  %v1312 = vtanh.pop %v1286
  %v1313 = vtanh.pop %v1287
  %v1314 = vtanh.pop %v1288
  %v1315 = vtanh.pop %v1289
  %v1316 = vtanh.pop %v1290
  %v1317 = vtanh.pop %v1291
  %v1318 = vtanh.pop %v1292
  %v1319 = vtanh.pop %v1293
  %v1320 = vtanh.pop %v1294
  %v1321 = vtanh.pop %v1295
  %v1322 = vtanh.pop %v1296
  %v1323 = vtanh.pop %v1297
  %v1324 = vtanh.pop %v1298
  %v1325 = vtanh.pop %v1299
  %v1326 = vtanh.pop %v1300
  %v1327 = vtanh.pop %v1301
  %v1328 = vtanh.pop %v1302
  %v1329 = vtanh.pop %v1303
  %v1330 = vtanh.pop %v1304
  %v1331 = vtanh.pop %v1305
  %v1332 = vtanh.pop %v1306
  %v1333 = vtanh.pop %v1307
  %v1334 = vtanh.pop %v1308
  %1361 = vrot.lane.b32.xlu0 %v1309, 32
  %v1362 = vpop.permute.xlu0 %1361
  %1363 = vrot.lane.b32.xlu0 %v1310, 32
  %v1364 = vpop.permute.xlu0 %1363
  %1365 = vrot.lane.b32.xlu0 %v1311, 32
  %v1366 = vpop.permute.xlu0 %1365
  %1367 = vrot.lane.b32.xlu0 %v1312, 32
  %v1368 = vpop.permute.xlu0 %1367
  %1369 = vrot.lane.b32.xlu0 %v1313, 32
  %v1370 = vpop.permute.xlu0 %1369
  %1371 = vrot.lane.b32.xlu0 %v1314, 32
  %v1372 = vpop.permute.xlu0 %1371
  %1373 = vrot.lane.b32.xlu0 %v1315, 32
  %v1374 = vpop.permute.xlu0 %1373
  %1375 = vrot.lane.b32.xlu0 %v1316, 32
  %v1376 = vpop.permute.xlu0 %1375
  %1377 = vrot.lane.b32.xlu0 %v1317, 32
  %v1378 = vpop.permute.xlu0 %1377
  %1379 = vrot.lane.b32.xlu0 %v1318, 32
  %v1380 = vpop.permute.xlu0 %1379
  %1381 = vrot.lane.b32.xlu0 %v1319, 32
  %v1382 = vpop.permute.xlu0 %1381
  %1383 = vrot.lane.b32.xlu0 %v1320, 32
  %v1384 = vpop.permute.xlu0 %1383
  %1385 = vrot.lane.b32.xlu0 %v1321, 32
  %v1386 = vpop.permute.xlu0 %1385
  %1387 = vrot.lane.b32.xlu0 %v1322, 32
  %v1388 = vpop.permute.xlu0 %1387
  %1389 = vrot.lane.b32.xlu0 %v1323, 32
  %v1390 = vpop.permute.xlu0 %1389
  %1391 = vrot.lane.b32.xlu0 %v1324, 32
  %v1392 = vpop.permute.xlu0 %1391
  %1393 = vrot.lane.b32.xlu0 %v1325, 32
  %v1394 = vpop.permute.xlu0 %1393
  %1395 = vrot.lane.b32.xlu0 %v1326, 32
  %v1396 = vpop.permute.xlu0 %1395
  %1397 = vrot.lane.b32.xlu0 %v1327, 32
  %v1398 = vpop.permute.xlu0 %1397
  %1399 = vrot.lane.b32.xlu0 %v1328, 32
  %v1400 = vpop.permute.xlu0 %1399
  %1401 = vrot.lane.b32.xlu0 %v1329, 32
  %v1402 = vpop.permute.xlu0 %1401
  %1403 = vrot.lane.b32.xlu0 %v1330, 32
  %v1404 = vpop.permute.xlu0 %1403
  %1405 = vrot.lane.b32.xlu0 %v1331, 32
  %v1406 = vpop.permute.xlu0 %1405
  %1407 = vrot.lane.b32.xlu0 %v1332, 32
  %v1408 = vpop.permute.xlu0 %1407
  %1409 = vrot.lane.b32.xlu0 %v1333, 32
  %v1410 = vpop.permute.xlu0 %1409
  %1411 = vrot.lane.b32.xlu0 %v1334, 32
  %v1412 = vpop.permute.xlu0 %1411
  %1439 = vst.msk [vmem:[%s4] sm:$0xff] %vm155, %v1362
  %1440 = vst.msk [vmem:[%s4 + $0x8] sm:$0xff] %vm155, %v1364
  %1441 = vst.msk [vmem:[%s4 + $0x10] sm:$0xff] %vm155, %v1366
  %1442 = vst.msk [vmem:[%s4 + $0x18] sm:$0xff] %vm155, %v1368
  %1443 = vst.msk [vmem:[%s4 + $0x20] sm:$0xff] %vm155, %v1370
  %1444 = vst.msk [vmem:[%s4 + $0x28] sm:$0xff] %vm155, %v1372
  %1445 = vst.msk [vmem:[%s4 + $0x30] sm:$0xff] %vm155, %v1374
  %1446 = vst.msk [vmem:[%s4 + $0x38] sm:$0xff] %vm155, %v1376
  %1447 = vst.msk [vmem:[%s4 + $0x40] sm:$0xff] %vm155, %v1378
  %1448 = vst.msk [vmem:[%s4 + $0x48] sm:$0xff] %vm155, %v1380
  %1449 = vst.msk [vmem:[%s4 + $0x50] sm:$0xff] %vm155, %v1382
  %1450 = vst.msk [vmem:[%s4 + $0x58] sm:$0xff] %vm155, %v1384
  %1451 = vst.msk [vmem:[%s4 + $0x60] sm:$0xff] %vm155, %v1386
  %1452 = vst.msk [vmem:[%s4 + $0x68] sm:$0xff] %vm155, %v1388
  %1453 = vst.msk [vmem:[%s4 + $0x70] sm:$0xff] %vm155, %v1390
  %1454 = vst.msk [vmem:[%s4 + $0x78] sm:$0xff] %vm155, %v1392
  %1455 = vst.msk [vmem:[%s4 + $0x80] sm:$0xff] %vm155, %v1394
  %1456 = vst.msk [vmem:[%s4 + $0x88] sm:$0xff] %vm155, %v1396
  %1457 = vst.msk [vmem:[%s4 + $0x90] sm:$0xff] %vm155, %v1398
  %1458 = vst.msk [vmem:[%s4 + $0x98] sm:$0xff] %vm155, %v1400
  %1459 = vst.msk [vmem:[%s4 + $0xa0] sm:$0xff] %vm155, %v1402
  %1460 = vst.msk [vmem:[%s4 + $0xa8] sm:$0xff] %vm155, %v1404
  %1461 = vst.msk [vmem:[%s4 + $0xb0] sm:$0xff] %vm155, %v1406
  %1462 = vst.msk [vmem:[%s4 + $0xb8] sm:$0xff] %vm155, %v1408
  %1463 = vst.msk [vmem:[%s4 + $0xc0] sm:$0xff] %vm155, %v1410
  %1464 = vst.msk [vmem:[%s4 + $0xc8] sm:$0xff] %vm155, %v1412
  // Predicated region
  $region18: #{tpu_custom_call.1} parent=0 // pred_check
    _
  $region19: #{tpu_custom_call.1} parent=0 // pred_check_branch
    %1466 = sbr.rel (0) target = $region21
  $region20: #{tpu_custom_call.1} parent=0 // pred_region
    _
  $region21: #{tpu_custom_call.1} parent=0 // pred_fallthru
    _
  // Predicated region
  $region22: #{tpu_custom_call.1} parent=0 // pred_check
    _
  $region23: #{tpu_custom_call.1} parent=0 // pred_check_branch
    %1468 = sbr.rel (0) target = $region25
  $region24: #{tpu_custom_call.1} parent=0 // pred_region
    _
  $region25: #{tpu_custom_call.1} parent=0 // pred_fallthru
    _

</llo_original>
